<compile_context>
chip_gen: v5e
topology: v5e:2x2
jax: 0.10.0
libtpu: 0.0.40
codegen_flags: <defaults>
</compile_context>

<pallas_src>
import jax
import jax.numpy as jnp
from jax.experimental import pallas as pl
from jax.experimental.pallas import tpu as pltpu


def _identity_kernel(x_ref, o_ref):
    # Bare copy of the VMEM tile; no extra VPU work (the kernel is HBM-bound).
    o_ref[...] = x_ref[...]


# Lane-dense fold candidates (largest first) and fallback lane-tile size.
_LANE_CANDIDATES = (2048, 1024, 512, 256, 128)
_FALLBACK_LANE_TILE = 128 * 1024  # multiple of 128; 512 KiB per f32 tile


def _pick_row_tile(m: int) -> int:
    """Row-block size: multiple of 8 (and of 32 -> packed-dtype friendly),
    capped so a tile stays <= ~4 MiB f32, and chosen so mid-size inputs still
    yield >= 2 row blocks (keeps both v7x TensorCores busy)."""
    if m >= 1024:
        return 512
    if m >= 16:
        # ~half the rows, rounded up to a multiple of 8 -> 2 grid blocks.
        return ((m + 15) // 16) * 8
    return m  # full extent (always a legal block dim)


def identity(x: jax.Array) -> jax.Array:
    """Identity forward: returns a tensor equal to x (same shape & dtype)."""
    orig_shape = x.shape

    # Degenerate case: nothing to move (also avoids 0-sized grid math).
    if x.size == 0:
        return x

    total = x.size

    # Fold the flat tensor into a lane-dense 2-D view: last dim a large
    # multiple of 128 whenever possible.
    n = None
    for cand in _LANE_CANDIDATES:
        if total % cand == 0:
            n = cand
            break

    if n is not None:
        m = total // n
        tm = _pick_row_tile(m)
        tn = n  # n <= 2048 and already a multiple of 128
    else:
        # Total not a multiple of 128: keep one row and tile the lane axis
        # with cdiv + a masked edge block (bounded VMEM, no giant block).
        m, n = 1, total
        tm = 1
        tn = n if n <= _FALLBACK_LANE_TILE else _FALLBACK_LANE_TILE

    x2 = x.reshape(m, n)
    grid = (pl.cdiv(m, tm), pl.cdiv(n, tn))

    out = pl.pallas_call(
        _identity_kernel,
        out_shape=jax.ShapeDtypeStruct((m, n), x2.dtype),
        grid_spec=pltpu.PrefetchScalarGridSpec(
            num_scalar_prefetch=0,
            grid=grid,
            in_specs=[pl.BlockSpec((tm, tn), lambda i, j: (i, j))],
            out_specs=pl.BlockSpec((tm, tn), lambda i, j: (i, j)),
        ),
        # Output reuses the input HBM buffer: no second allocation.
        input_output_aliases={0: 0},
        cost_estimate=pl.CostEstimate(
            flops=0,
            transcendentals=0,
            bytes_accessed=2 * total * x2.dtype.itemsize,
        ),
        compiler_params=pltpu.CompilerParams(
            dimension_semantics=("parallel", "parallel"),
        ),
    )(x2)

    return out.reshape(orig_shape)


if __name__ == "__main__":
    key = jax.random.PRNGKey(0)

    # NCHW input, consistent with a typical conv-net feature map.
    x = jax.random.normal(key, (2, 4, 16, 16), dtype=jnp.float32)
    y = identity(x)
    jax.block_until_ready(y)
    assert y.shape == x.shape
    assert y.dtype == x.dtype
    assert bool(jnp.all(y == x))

    # Exercise the non-128-divisible fallback path as well.
    x2 = jax.random.normal(jax.random.PRNGKey(0), (3, 5), dtype=jnp.float32)
    y2 = identity(x2)
    jax.block_until_ready(y2)
    assert y2.shape == x2.shape
    assert bool(jnp.all(y2 == x2))

    print("KERNEL_OK")
</pallas_src>

<mosaic_0001>
module attributes {stable_mosaic.version = 11 : i64} {
  func.func @_identity_kernel(%arg0: i32, %arg1: i32, %arg2: memref<1x2048xf32, #tpu.memory_space<vmem>>, %arg3: memref<1x2048xf32, #tpu.memory_space<vmem>>) attributes {dimension_semantics = [#tpu.dimension_semantics<parallel>, #tpu.dimension_semantics<parallel>], iteration_bounds = array<i64: 1, 1>, scalar_prefetch = 0 : i64, scratch_operands = 0 : i64, tpu.core_type = #tpu.core_type<tc>, window_params = [{transform_indices = @transform_0, window_bounds = array<i64: 1, 2048>}, {transform_indices = @transform_1, window_bounds = array<i64: 1, 2048>}]} {
    %c0 = arith.constant 0 : index
    %c0_0 = arith.constant 0 : index
    %0 = vector.load %arg2[%c0, %c0_0] : memref<1x2048xf32, #tpu.memory_space<vmem>>, vector<1x2048xf32>
    %c0_1 = arith.constant 0 : index
    %c0_2 = arith.constant 0 : index
    %1 = vector.load %arg3[%c0_1, %c0_2] : memref<1x2048xf32, #tpu.memory_space<vmem>>, vector<1x2048xf32>
    tpu.vector_store %arg3[%c0_1, %c0_2], %0 {strides = array<i32>} : memref<1x2048xf32, #tpu.memory_space<vmem>>, vector<1x2048xf32>,
    return
  }
  func.func @transform_0(%arg0: i32, %arg1: i32) -> (i32, i32) {
    %c0_i32 = arith.constant 0 : i32
    return %arg0, %arg1 : i32, i32
  }
  func.func @transform_1(%arg0: i32, %arg1: i32) -> (i32, i32) {
    %c0_i32 = arith.constant 0 : i32
    return %arg0, %arg1 : i32, i32
  }
}

</mosaic_0001>

<llo_original>
// kernel: tpu_custom_call.1
$region0: #{tpu_custom_call.1}
  #allocation0 [shape = 'u32[]', space=smem, size = 0x4, offset = 0x4, fixed_abs, tag = 'smem constant byte address 0x4 - core index']
  #allocation1 [shape = 'u32[72,128]{1,0:T(1,128)}', space=vmem, size = 0x9000, scoped, tag = 'internal scratch']
  %s0 = inlined_call_operand.hbm [shape: f32[1,2048], index: 0, kind: input, shape index: {}, may-alias: {0,1}]
  %s1 = inlined_call_operand.hbm [shape: f32[1,2048], index: 1, kind: output, shape index: {}, may-alias: {0,1}]
  %s2 = sld [smem:[#allocation0]]
  $region18: #{tpu_custom_call.1} parent=0
    _
  %s4 = ssub.s32 1, %s2
  %s5 = scalar_select 0, %s4, %s2
  $region1: #{tpu_custom_call.1} parent=0
    #allocation2 [shape = 'u8[8192]{0}', space=vmem, size = 0x2000, scoped, tag = 'input window, operand 0, single buffered']
    #allocation3 [shape = 's32[1]{0}', space=sflag, size = 0x4, scoped, tag = 'scoped memory for tpu_custom_call.1']
    #allocation4 [shape = 's32[1]{0}', space=sflag, size = 0x4, scoped, tag = 'scoped memory for tpu_custom_call.1']
    #allocation5 [shape = 'u8[8192]{0}', space=vmem, size = 0x2000, scoped, tag = 'output window, operand 0, single buffered']
    %6 = vsyncpa [#allocation3], 0
    %7 = vsyncpa [#allocation4], 0
    // Predicated region
    $region2: #{tpu_custom_call.1} parent=1 // pred_check
      _
    $region3: #{tpu_custom_call.1} parent=1 // pred_check_branch
      %9 = sbr.rel (0) target = $region5
    $region4: #{tpu_custom_call.1} parent=1 // pred_region
      %11 = vsyncadd [#allocation3], 0
      %s13 = sshll.u32 %s0, 4
      %s14 = int_to_ptr.hbm [resolvable:$true] %s13
      %s15 = sshll.u32 [#allocation2], 4
      %s16 = int_to_ptr.vmem [resolvable:$true] %s15
      %18 = dma.hbm_to_vmem [thread:$0]  %s14, 256, %s16, [#allocation3]
    $region5: #{tpu_custom_call.1} parent=1 // pred_fallthru
      _
    // Predicated region
    $region6: #{tpu_custom_call.1} parent=1 // pred_check
      _
    $region7: #{tpu_custom_call.1} parent=1 // pred_check_branch
      %20 = sbr.rel (0) target = $region9
    $region8: #{tpu_custom_call.1} parent=1 // pred_region
      %22 = dma.done [#allocation3], 256
    $region9: #{tpu_custom_call.1} parent=1 // pred_fallthru
      _
    %v23 = vld [vmem:[#allocation2] sm:$0xff]
    %v24 = vld [vmem:[#allocation2 + $0x8] sm:$0xff]
    %25 = vst [vmem:[#allocation5] sm:$0xff] %v23
    %26 = vst [vmem:[#allocation5 + $0x8] sm:$0xff] %v24
    // Predicated region
    $region10: #{tpu_custom_call.1} parent=1 // pred_check
      _
    $region11: #{tpu_custom_call.1} parent=1 // pred_check_branch
      %28 = sbr.rel (0) target = $region13
    $region12: #{tpu_custom_call.1} parent=1 // pred_region
      %30 = vsyncadd [#allocation4], 0
      %s32 = sshll.u32 [#allocation5], 4
      %s33 = int_to_ptr.vmem [resolvable:$true] %s32
      %s34 = sshll.u32 %s1, 4
      %s35 = int_to_ptr.hbm [resolvable:$true] %s34
      %37 = dma.vmem_to_hbm [thread:$0]  %s33, 256, %s35, [#allocation4]
    $region13: #{tpu_custom_call.1} parent=1 // pred_fallthru
      _
    // Predicated region
    $region14: #{tpu_custom_call.1} parent=1 // pred_check
      _
    $region15: #{tpu_custom_call.1} parent=1 // pred_check_branch
      %39 = sbr.rel (0) target = $region17
    $region16: #{tpu_custom_call.1} parent=1 // pred_region
      %41 = dma.done [#allocation4], 256
    $region17: #{tpu_custom_call.1} parent=1 // pred_fallthru
      _
    %42 = vsyncpa [#allocation3], 1
    %43 = vsyncpa [#allocation4], 1

</llo_original>
